<compile_context>
chip_gen: v6e
topology: v6e:2x2x1
jax: 0.10.0
libtpu: 0.0.40
codegen_flags: <defaults>
</compile_context>

<pallas_src>
import numpy as np
import jax
import jax.numpy as jnp
from jax import lax
from jax.experimental import pallas as pl
from jax.experimental.pallas import tpu as pltpu


def _round_up(x: int, m: int) -> int:
    return (x + m - 1) // m * m


def _iattention_kernel(q_ref, enc_ref, seg_ref, out_ref, m_ref, l_ref):
    p = pl.program_id(0)      # 0 = stats pass, 1 = emit pass
    j = pl.program_id(1)      # node-tile index

    B = q_ref.shape[0]
    tile_n = enc_ref.shape[0]
    neg = jnp.float32(-1e30)

    @pl.when(jnp.logical_and(p == 0, j == 0))
    def _init():
        m_ref[...] = jnp.full_like(m_ref, neg)
        l_ref[...] = jnp.zeros_like(l_ref)

    # scores for this tile: [B, tile_n]; bf16 MXU operands, f32 accumulation,
    # contraction over the feature axis without an explicit transpose.
    s = lax.dot_general(
        q_ref[...], enc_ref[...],
        dimension_numbers=(((1,), (1,)), ((), ())),
        preferred_element_type=jnp.float32)

    seg = seg_ref[...]                                            # [1, tile_n] int32
    row = lax.broadcasted_iota(jnp.int32, (B, tile_n), 0)         # [B, tile_n]
    mask = row == seg                                             # one-hot along B
    s_m = jnp.where(mask, s, neg)                                 # [B, tile_n]

    @pl.when(p == 0)
    def _stats():
        m_old = m_ref[...]                                        # [B, 1]
        m_new = jnp.maximum(m_old, jnp.max(s_m, axis=-1, keepdims=True))
        # explicit mask on the exp protects tiles that contain no node of a tree
        e = jnp.where(mask, jnp.exp(s_m - m_new), jnp.float32(0.0))
        l_ref[...] = l_ref[...] * jnp.exp(m_old - m_new) + jnp.sum(e, axis=-1, keepdims=True)
        m_ref[...] = m_new
        out_ref[...] = jnp.zeros_like(out_ref)

    @pl.when(p == 1)
    def _emit():
        # exp(-1e30 - m) underflows to exactly 0 -> no extra mask multiply needed here.
        e = jnp.exp(s_m - m_ref[...])                             # [B, tile_n]
        inv_l = jnp.float32(1.0) / l_ref[...]                     # [B, 1]: only B divides
        # exactly one tree matches each node -> collapse the (small) batch axis
        out_ref[...] = jnp.sum(e * inv_l, axis=0, keepdims=True)  # [1, tile_n] lane-dense


def iattention_forward(prev_hidden_states, encoder_output, tree_sizes, weight,
                       tile_n_target: int = 512):
    """prev_hidden_states: [B, h_dec], encoder_output: [N, h_enc],
    tree_sizes: static python list of ints (all > 0) summing to N,
    weight: [h_enc, h_dec] (bias-free projection h_dec -> h_enc).
    Returns attention weights [N, 1] (float32)."""
    B, h_dec = prev_hidden_states.shape
    N, h_enc = encoder_output.shape
    tree_sizes = [int(t) for t in tree_sizes]
    assert len(tree_sizes) == B
    assert sum(tree_sizes) == N
    assert all(t > 0 for t in tree_sizes), "empty trees would give 0/0 in the softmax"
    assert tuple(weight.shape) == (h_enc, h_dec)

    # q = prev_hidden @ W.T, hoisted out of the kernel (degenerate, sublane-padded matmul).
    q = jnp.dot(prev_hidden_states.astype(jnp.float32),
                jnp.asarray(weight).astype(jnp.float32).T)         # [B, h_enc] f32
    q = q.astype(jnp.bfloat16)                                     # bf16 MXU operand

    # node-axis tiling: lane-dense multiples of 128, up to tile_n_target rows per step
    tile_n = min(_round_up(tile_n_target, 128), _round_up(N, 128))
    n_pad = _round_up(N, tile_n)
    num_tiles = n_pad // tile_n

    # static [1, n_pad] segment-id row (padding = -1 matches no tree)
    seg_np = np.full((1, n_pad), -1, dtype=np.int32)
    seg_np[0, :N] = np.repeat(np.arange(B, dtype=np.int32),
                              np.asarray(tree_sizes, dtype=np.int64))
    seg_ids = jnp.asarray(seg_np)

    enc = jnp.zeros((n_pad, h_enc), jnp.bfloat16)
    enc = enc.at[:N].set(encoder_output.astype(jnp.bfloat16))

    # VMEM budget: double-buffered encoder / seg / out tiles + resident q + scratch (+4x margin)
    enc_tile_bytes = tile_n * h_enc * 2
    io_tile_bytes = tile_n * (4 + 4)
    vmem_needed = (2 * (enc_tile_bytes + io_tile_bytes)
                   + B * h_enc * 2
                   + 2 * 8 * _round_up(B, 8) * 128)
    vmem_limit = int(min(max(4 * vmem_needed, 4 << 20), 64 << 20))

    grid_spec = pltpu.PrefetchScalarGridSpec(
        num_scalar_prefetch=0,
        grid=(2, num_tiles),                                        # (pass, node tile)
        in_specs=[
            pl.BlockSpec((B, h_enc), lambda p, j: (0, 0)),          # q: resident
            pl.BlockSpec((tile_n, h_enc), lambda p, j: (j, 0)),     # encoder tile (streamed)
            pl.BlockSpec((1, tile_n), lambda p, j: (0, j)),         # segment ids
        ],
        out_specs=pl.BlockSpec((1, tile_n), lambda p, j: (0, j)),   # lane-dense output slab
        scratch_shapes=[
            pltpu.VMEM((B, 1), jnp.float32),                        # running per-tree max
            pltpu.VMEM((B, 1), jnp.float32),                        # running per-tree sum-exp
        ],
    )

    out = pl.pallas_call(
        _iattention_kernel,
        out_shape=jax.ShapeDtypeStruct((1, n_pad), jnp.float32),
        grid_spec=grid_spec,
        compiler_params=pltpu.CompilerParams(
            # carried online-softmax state -> both grid axes must stay sequential
            dimension_semantics=("arbitrary", "arbitrary"),
            vmem_limit_bytes=vmem_limit,
        ),
    )(q, enc, seg_ids)

    return out[0, :N].reshape(N, 1)


def _reference(prev_hidden, encoder_output, tree_sizes, weight):
    """Pure numpy reference (with bf16 rounding of the kernel's MXU operands)."""
    q = np.asarray(prev_hidden, np.float32) @ np.asarray(weight, np.float32).T
    q = np.asarray(jnp.asarray(q).astype(jnp.bfloat16).astype(jnp.float32))
    enc = np.asarray(jnp.asarray(encoder_output).astype(jnp.bfloat16).astype(jnp.float32))
    out = np.zeros((enc.shape[0], 1), np.float32)
    off = 0
    for b, t in enumerate(tree_sizes):
        s = enc[off:off + t] @ q[b]
        s = s - s.max()
        e = np.exp(s)
        out[off:off + t, 0] = e / e.sum()
        off += t
    return out


if __name__ == "__main__":
    # --- small demo case (single tile) ---
    k_ph, k_enc, k_w = jax.random.split(jax.random.PRNGKey(0), 3)
    batch, h_dec, h_enc = 2, 16, 32
    tree_sizes = [3, 5]
    n_nodes = sum(tree_sizes)

    prev_hidden = jax.random.normal(k_ph, (batch, h_dec), dtype=jnp.float32)
    encoder_out = jax.random.normal(k_enc, (n_nodes, h_enc), dtype=jnp.float32)
    w = jax.random.normal(k_w, (h_enc, h_dec), dtype=jnp.float32) * 0.1

    attn = iattention_forward(prev_hidden, encoder_out, tree_sizes, w)
    attn = jax.block_until_ready(attn)
    assert attn.shape == (n_nodes, 1)

    ref = _reference(prev_hidden, encoder_out, tree_sizes, w)
    np.testing.assert_allclose(np.asarray(attn), ref, atol=5e-3, rtol=2e-2)
    sums = np.add.reduceat(np.asarray(attn[:, 0]), np.cumsum([0] + tree_sizes[:-1]))
    assert np.allclose(sums, 1.0, atol=1e-4), sums

    # --- multi-tile case (exercises the two-pass online segmented softmax) ---
    k_ph2, k_enc2, k_w2 = jax.random.split(jax.random.PRNGKey(1), 3)
    batch2, h_dec2, h_enc2 = 3, 16, 128
    tree_sizes2 = [200, 150, 250]          # N = 600 -> two 512-row tiles (padded to 1024)
    n_nodes2 = sum(tree_sizes2)

    prev_hidden2 = jax.random.normal(k_ph2, (batch2, h_dec2), dtype=jnp.float32)
    encoder_out2 = jax.random.normal(k_enc2, (n_nodes2, h_enc2), dtype=jnp.float32)
    w2 = jax.random.normal(k_w2, (h_enc2, h_dec2), dtype=jnp.float32) * 0.1

    attn2 = iattention_forward(prev_hidden2, encoder_out2, tree_sizes2, w2)
    attn2 = jax.block_until_ready(attn2)
    ref2 = _reference(prev_hidden2, encoder_out2, tree_sizes2, w2)
    np.testing.assert_allclose(np.asarray(attn2), ref2, atol=5e-3, rtol=2e-2)
    sums2 = np.add.reduceat(np.asarray(attn2[:, 0]), np.cumsum([0] + tree_sizes2[:-1]))
    assert np.allclose(sums2, 1.0, atol=1e-4), sums2

    print("KERNEL_OK")
</pallas_src>

<mosaic_0001>
module attributes {stable_mosaic.version = 11 : i64} {
  func.func @_iattention_kernel(%arg0: i32, %arg1: i32, %arg2: memref<2x32xbf16, #tpu.memory_space<vmem>>, %arg3: memref<128x32xbf16, #tpu.memory_space<vmem>>, %arg4: memref<1x128xi32, #tpu.memory_space<vmem>>, %arg5: memref<1x128xf32, #tpu.memory_space<vmem>>, %arg6: memref<2x1xf32, #tpu.memory_space<vmem>>, %arg7: memref<2x1xf32, #tpu.memory_space<vmem>>) attributes {dimension_semantics = [#tpu.dimension_semantics<arbitrary>, #tpu.dimension_semantics<arbitrary>], iteration_bounds = array<i64: 2, 1>, scalar_prefetch = 0 : i64, scratch_operands = 2 : i64, tpu.core_type = #tpu.core_type<tc>, window_params = [{pipeline_mode = #tpu.pipeline_mode<synchronous>, transform_indices = @transform_0, window_bounds = array<i64: 2, 32>}, {transform_indices = @transform_1, window_bounds = array<i64: 128, 32>}, {transform_indices = @transform_2, window_bounds = array<i64: 1, 128>}, {transform_indices = @transform_3, window_bounds = array<i64: 1, 128>}]} {
    %c0_i32 = arith.constant 0 : i32
    %0 = arith.cmpi eq, %arg0, %c0_i32 : i32
    %c0_i32_0 = arith.constant 0 : i32
    %1 = arith.cmpi eq, %arg1, %c0_i32_0 : i32
    %2 = arith.andi %0, %1 : i1
    %3 = arith.extui %2 : i1 to i32
    %cst = arith.constant -1.000000e+30 : f32
    %c0_i32_1 = arith.constant 0 : i32
    %4 = arith.cmpi ne, %3, %c0_i32_1 : i32
    scf.if %4 {
      %20 = vector.broadcast %cst : f32 to vector<2x1xf32>
      %c0_12 = arith.constant 0 : index
      %c0_13 = arith.constant 0 : index
      %21 = vector.load %arg6[%c0_12, %c0_13] : memref<2x1xf32, #tpu.memory_space<vmem>>, vector<2x1xf32>
      tpu.vector_store %arg6[%c0_12, %c0_13], %20 {strides = array<i32>} : memref<2x1xf32, #tpu.memory_space<vmem>>, vector<2x1xf32>,
      %cst_14 = arith.constant 0.000000e+00 : f32
      %22 = vector.broadcast %cst_14 : f32 to vector<2x1xf32>
      %c0_15 = arith.constant 0 : index
      %c0_16 = arith.constant 0 : index
      %23 = vector.load %arg7[%c0_15, %c0_16] : memref<2x1xf32, #tpu.memory_space<vmem>>, vector<2x1xf32>
      tpu.vector_store %arg7[%c0_15, %c0_16], %22 {strides = array<i32>} : memref<2x1xf32, #tpu.memory_space<vmem>>, vector<2x1xf32>,
    } else {
    }
    %c0 = arith.constant 0 : index
    %c0_2 = arith.constant 0 : index
    %5 = vector.load %arg2[%c0, %c0_2] : memref<2x32xbf16, #tpu.memory_space<vmem>>, vector<2x32xbf16>
    %c0_3 = arith.constant 0 : index
    %c0_4 = arith.constant 0 : index
    %6 = vector.load %arg3[%c0_3, %c0_4] : memref<128x32xbf16, #tpu.memory_space<vmem>>, vector<128x32xbf16>
    %cst_5 = arith.constant dense<0.000000e+00> : vector<2x128xf32>
    %7 = tpu.matmul %5, %6, %cst_5 {dimension_numbers = #tpu.dot_dimension_numbers<[1], [1], [0], [0], [0, 0, 1, 0], [], []>} : vector<2x32xbf16>, vector<128x32xbf16>, vector<2x128xf32> -> vector<2x128xf32>
    %c0_6 = arith.constant 0 : index
    %c0_7 = arith.constant 0 : index
    %8 = vector.load %arg4[%c0_6, %c0_7] : memref<1x128xi32, #tpu.memory_space<vmem>>, vector<1x128xi32>
    %9 = tpu.iota {dimensions = array<i32: 0>} : vector<2x128xi32>
    %10 = vector.broadcast %8 : vector<1x128xi32> to vector<2x128xi32>
    %11 = arith.cmpi eq, %9, %10 : vector<2x128xi32>
    %cst_8 = arith.constant -1.000000e+30 : f32
    %12 = vector.broadcast %cst_8 : f32 to vector<2x128xf32>
    %13 = arith.select %11, %7, %12 : vector<2x128xi1>, vector<2x128xf32>
    %c0_i32_9 = arith.constant 0 : i32
    %14 = arith.cmpi eq, %arg0, %c0_i32_9 : i32
    %15 = arith.extui %14 : i1 to i32
    %c0_i32_10 = arith.constant 0 : i32
    %16 = arith.cmpi ne, %15, %c0_i32_10 : i32
    scf.if %16 {
      %c0_12 = arith.constant 0 : index
      %c0_13 = arith.constant 0 : index
      %20 = vector.load %arg6[%c0_12, %c0_13] : memref<2x1xf32, #tpu.memory_space<vmem>>, vector<2x1xf32>
      %cst_14 = arith.constant dense<0xFF800000> : vector<2xf32>
      %21 = vector.multi_reduction <maximumf>, %13, %cst_14 [1] : vector<2x128xf32> to vector<2xf32>
      %22 = vector.shape_cast %21 : vector<2xf32> to vector<2x1xf32>
      %23 = arith.maximumf %20, %22 : vector<2x1xf32>
      %24 = vector.broadcast %23 : vector<2x1xf32> to vector<2x128xf32>
      %25 = arith.subf %13, %24 : vector<2x128xf32>
      %26 = math.exp %25 : vector<2x128xf32>
      %cst_15 = arith.constant 0.000000e+00 : f32
      %27 = vector.broadcast %cst_15 : f32 to vector<2x128xf32>
      %28 = arith.select %11, %26, %27 : vector<2x128xi1>, vector<2x128xf32>
      %c0_16 = arith.constant 0 : index
      %c0_17 = arith.constant 0 : index
      %29 = vector.load %arg7[%c0_16, %c0_17] : memref<2x1xf32, #tpu.memory_space<vmem>>, vector<2x1xf32>
      %30 = arith.subf %20, %23 : vector<2x1xf32>
      %31 = math.exp %30 : vector<2x1xf32>
      %32 = arith.mulf %29, %31 : vector<2x1xf32>
      %cst_18 = arith.constant dense<0.000000e+00> : vector<2xf32>
      %33 = vector.multi_reduction <add>, %28, %cst_18 [1] : vector<2x128xf32> to vector<2xf32>
      %34 = vector.shape_cast %33 : vector<2xf32> to vector<2x1xf32>
      %35 = arith.addf %32, %34 : vector<2x1xf32>
      %c0_19 = arith.constant 0 : index
      %c0_20 = arith.constant 0 : index
      %36 = vector.load %arg7[%c0_19, %c0_20] : memref<2x1xf32, #tpu.memory_space<vmem>>, vector<2x1xf32>
      tpu.vector_store %arg7[%c0_19, %c0_20], %35 {strides = array<i32>} : memref<2x1xf32, #tpu.memory_space<vmem>>, vector<2x1xf32>,
      %c0_21 = arith.constant 0 : index
      %c0_22 = arith.constant 0 : index
      %37 = vector.load %arg6[%c0_21, %c0_22] : memref<2x1xf32, #tpu.memory_space<vmem>>, vector<2x1xf32>
      tpu.vector_store %arg6[%c0_21, %c0_22], %23 {strides = array<i32>} : memref<2x1xf32, #tpu.memory_space<vmem>>, vector<2x1xf32>,
      %cst_23 = arith.constant 0.000000e+00 : f32
      %38 = vector.broadcast %cst_23 : f32 to vector<1x128xf32>
      %c0_24 = arith.constant 0 : index
      %c0_25 = arith.constant 0 : index
      %39 = vector.load %arg5[%c0_24, %c0_25] : memref<1x128xf32, #tpu.memory_space<vmem>>, vector<1x128xf32>
      tpu.vector_store %arg5[%c0_24, %c0_25], %38 {strides = array<i32>} : memref<1x128xf32, #tpu.memory_space<vmem>>, vector<1x128xf32>,
    } else {
    }
    %c1_i32 = arith.constant 1 : i32
    %17 = arith.cmpi eq, %arg0, %c1_i32 : i32
    %18 = arith.extui %17 : i1 to i32
    %c0_i32_11 = arith.constant 0 : i32
    %19 = arith.cmpi ne, %18, %c0_i32_11 : i32
    scf.if %19 {
      %c0_12 = arith.constant 0 : index
      %c0_13 = arith.constant 0 : index
      %20 = vector.load %arg6[%c0_12, %c0_13] : memref<2x1xf32, #tpu.memory_space<vmem>>, vector<2x1xf32>
      %21 = vector.broadcast %20 : vector<2x1xf32> to vector<2x128xf32>
      %22 = arith.subf %13, %21 : vector<2x128xf32>
      %23 = math.exp %22 : vector<2x128xf32>
      %c0_14 = arith.constant 0 : index
      %c0_15 = arith.constant 0 : index
      %24 = vector.load %arg7[%c0_14, %c0_15] : memref<2x1xf32, #tpu.memory_space<vmem>>, vector<2x1xf32>
      %cst_16 = arith.constant 1.000000e+00 : f32
      %25 = vector.broadcast %cst_16 : f32 to vector<2x1xf32>
      %26 = arith.divf %25, %24 : vector<2x1xf32>
      %27 = vector.broadcast %26 : vector<2x1xf32> to vector<2x128xf32>
      %28 = arith.mulf %23, %27 : vector<2x128xf32>
      %cst_17 = arith.constant dense<0.000000e+00> : vector<128xf32>
      %29 = vector.multi_reduction <add>, %28, %cst_17 [0] : vector<2x128xf32> to vector<128xf32>
      %30 = vector.shape_cast %29 : vector<128xf32> to vector<1x128xf32>
      %c0_18 = arith.constant 0 : index
      %c0_19 = arith.constant 0 : index
      %31 = vector.load %arg5[%c0_18, %c0_19] : memref<1x128xf32, #tpu.memory_space<vmem>>, vector<1x128xf32>
      tpu.vector_store %arg5[%c0_18, %c0_19], %30 {strides = array<i32>} : memref<1x128xf32, #tpu.memory_space<vmem>>, vector<1x128xf32>,
    } else {
    }
    return
  }
  func.func @transform_0(%arg0: i32, %arg1: i32) -> (i32, i32) {
    %c0_i32 = arith.constant 0 : i32
    %c0_i32_0 = arith.constant 0 : i32
    %c0_i32_1 = arith.constant 0 : i32
    return %c0_i32, %c0_i32_0 : i32, i32
  }
  func.func @transform_1(%arg0: i32, %arg1: i32) -> (i32, i32) {
    %c0_i32 = arith.constant 0 : i32
    %c0_i32_0 = arith.constant 0 : i32
    return %arg1, %c0_i32 : i32, i32
  }
  func.func @transform_2(%arg0: i32, %arg1: i32) -> (i32, i32) {
    %c0_i32 = arith.constant 0 : i32
    %c0_i32_0 = arith.constant 0 : i32
    return %c0_i32, %arg1 : i32, i32
  }
  func.func @transform_3(%arg0: i32, %arg1: i32) -> (i32, i32) {
    %c0_i32 = arith.constant 0 : i32
    %c0_i32_0 = arith.constant 0 : i32
    return %c0_i32, %arg1 : i32, i32
  }
}

</mosaic_0001>

<llo_original>
// kernel: tpu_custom_call.1
$region0: #{tpu_custom_call.1}
  #allocation0 [shape = 'u32[]', space=smem, size = 0x4, offset = 0x4, fixed_abs, tag = 'smem constant byte address 0x4 - core index']
  #allocation1 [shape = 'u32[144,128]{1,0:T(1,128)}', space=vmem, size = 0x12000, scoped, tag = 'internal scratch']
  #allocation2 [shape = 'f32[2,1]{1,0:T(2,128)}', space=vmem, size = 0x400, scoped, tag = 'scratch operand']
  #allocation3 [shape = 'f32[2,1]{1,0:T(2,128)}', space=vmem, size = 0x400, scoped, tag = 'scratch operand']
  %s0 = inlined_call_operand.vmem [shape: bf16[2,32], index: 0, kind: input, shape index: {}]
  %s1 = inlined_call_operand.vmem [shape: bf16[128,32], index: 1, kind: input, shape index: {}]
  %s2 = inlined_call_operand.vmem [shape: s32[1,128], index: 2, kind: input, shape index: {}]
  %s3 = inlined_call_operand.hbm [shape: f32[1,128], index: 3, kind: output, shape index: {}]
  %s4 = sld [smem:[#allocation0]]
  $region57: #{tpu_custom_call.1} parent=0
    _
  %s6 = ssub.s32 1, %s4
  %s7 = scalar_select 0, %s6, %s4
  $region1: #{tpu_custom_call.1} parent=0
    #allocation4 [shape = 'u8[512]{0}', space=vmem, size = 0x400, scoped, tag = 'output window, operand 0, single buffered']
    #allocation5 [shape = 's32[2]{0}', space=sflag, size = 0x8, scoped, tag = 'scoped memory for tpu_custom_call.1']
    %8 = vsyncpa [#allocation5], 0
    loop: start=0, step=1, limit=4
    $region2: #{tpu_custom_call.1} parent=1 // loop_pre_header
      _
    $region3: #{tpu_custom_call.1} parent=1 // loop_header
      %s10 = sphi 0, %s14
      %p11 = scmp.ge.s32.totalorder %s10, 4
      %s17 = sphi 0, %s29
      %s18 = sphi 0, %s25
      %s19 = sphi 0, %s17
      %s20 = sphi 0, %s18
      %s21 = sphi 0, %s19
      %s22 = sphi 0, %s20
      %s30 = sphi 0, %s30
      %s32 = sphi 0, %s30
      %s33 = sphi 0, %s32
      %s47 = sphi 0, %s33
      %s53 = sphi 0, %s55
      %s56 = sphi 0, %s53
      %s57 = sphi 0, %s56
      %s73 = sphi 0, %s57
      %s79 = sphi 0, %s81
      %s82 = sphi 0, %s79
      %s83 = sphi 0, %s82
      %s99 = sphi 0, %s83
      %s105 = sphi 0, %s107
      %s108 = sphi 0, %s105
      %s109 = sphi 0, %s108
      %s125 = sphi 0, %s109
    $region4: #{tpu_custom_call.1} parent=1 // loop_header_branch
      %13 = sbr.rel (%p11) target = $region8
    $region5: #{tpu_custom_call.1} parent=1 // loop_body
      %s15 = ssub.s32 %s10, 1
      %s16 = ssub.s32 %s10, 2
      %s23 = sadd.s32 1, %s18
      %p24 = scmp.ge.s32.totalorder %s23, 1
      %s25 = scalar_select %p24, 0, %s23
      %s26 = sadd.s32 1, %s17
      %s27 = scalar_select %p24, %s26, %s17
      %p28 = scmp.ge.s32.totalorder %s27, 2
      %s29 = scalar_select %p28, 0, %s27
      %s31 = sadd.s32 %s30, 1
      %p34 = scmp.eq.s32.totalorder %s10, 1
      %p35 = scmp.ne.s32.totalorder %s30, %s32
      %p36 = scmp.eq.s32.totalorder %s10, 0
      %p37 = por %p35, %p36
      %p38 = scmp.ne.s32.totalorder %s30, %s32
      %p39 = scmp.eq.s32.totalorder %s15, 1
      %p40 = por %p38, %p39
      %p41 = scmp.ne.s32.totalorder %s32, %s33
      %p42 = scmp.eq.s32.totalorder %s15, 0
      %p43 = por %p41, %p42
      %p44 = scmp.ne.s32.totalorder %s32, %s33
      %p45 = scmp.eq.s32.totalorder %s16, 1
      %p46 = por %p44, %p45
      %p48 = scmp.ne.s32.totalorder %s33, %s47
      %p49 = scmp.eq.s32.totalorder %s16, 0
      %p50 = por %p48, %p49
      %s51 = ssub.s32 %s18, %s25
      %p52 = scmp.eq.s32.totalorder %s51, 0
      %s54 = sadd.s32 %s53, 1
      %s55 = scalar_select %p52, %s53, %s54
      %p58 = pneg %p52
      %p59 = scmp.eq.s32.totalorder %s10, 1
      %p60 = por %p58, %p59
      %p61 = scmp.ne.s32.totalorder %s53, %s56
      %p62 = scmp.eq.s32.totalorder %s10, 0
      %p63 = por %p61, %p62
      %p64 = scmp.ne.s32.totalorder %s53, %s56
      %p65 = scmp.eq.s32.totalorder %s15, 1
      %p66 = por %p64, %p65
      %p67 = scmp.ne.s32.totalorder %s56, %s57
      %p68 = scmp.eq.s32.totalorder %s15, 0
      %p69 = por %p67, %p68
      %p70 = scmp.ne.s32.totalorder %s56, %s57
      %p71 = scmp.eq.s32.totalorder %s16, 1
      %p72 = por %p70, %p71
      %p74 = scmp.ne.s32.totalorder %s57, %s73
      %p75 = scmp.eq.s32.totalorder %s16, 0
      %p76 = por %p74, %p75
      %s77 = ssub.s32 %s18, %s25
      %p78 = scmp.eq.s32.totalorder %s77, 0
      %s80 = sadd.s32 %s79, 1
      %s81 = scalar_select %p78, %s79, %s80
      %p84 = pneg %p78
      %p85 = scmp.eq.s32.totalorder %s10, 1
      %p86 = por %p84, %p85
      %p87 = scmp.ne.s32.totalorder %s79, %s82
      %p88 = scmp.eq.s32.totalorder %s10, 0
      %p89 = por %p87, %p88
      %p90 = scmp.ne.s32.totalorder %s79, %s82
      %p91 = scmp.eq.s32.totalorder %s15, 1
      %p92 = por %p90, %p91
      %p93 = scmp.ne.s32.totalorder %s82, %s83
      %p94 = scmp.eq.s32.totalorder %s15, 0
      %p95 = por %p93, %p94
      %p96 = scmp.ne.s32.totalorder %s82, %s83
      %p97 = scmp.eq.s32.totalorder %s16, 1
      %p98 = por %p96, %p97
      %p100 = scmp.ne.s32.totalorder %s83, %s99
      %p101 = scmp.eq.s32.totalorder %s16, 0
      %p102 = por %p100, %p101
      %s103 = ssub.s32 %s18, %s25
      %p104 = scmp.eq.s32.totalorder %s103, 0
      %s106 = sadd.s32 %s105, 1
      %s107 = scalar_select %p104, %s105, %s106
      %p110 = pneg %p104
      %p111 = scmp.eq.s32.totalorder %s10, 1
      %p112 = por %p110, %p111
      %p113 = scmp.ne.s32.totalorder %s105, %s108
      %p114 = scmp.eq.s32.totalorder %s10, 0
      %p115 = por %p113, %p114
      %p116 = scmp.ne.s32.totalorder %s105, %s108
      %p117 = scmp.eq.s32.totalorder %s15, 1
      %p118 = por %p116, %p117
      %p119 = scmp.ne.s32.totalorder %s108, %s109
      %p120 = scmp.eq.s32.totalorder %s15, 0
      %p121 = por %p119, %p120
      %p122 = scmp.ne.s32.totalorder %s108, %s109
      %p123 = scmp.eq.s32.totalorder %s16, 1
      %p124 = por %p122, %p123
      %p126 = scmp.ne.s32.totalorder %s109, %s125
      %p127 = scmp.eq.s32.totalorder %s16, 0
      %p128 = por %p126, %p127
      %p129 = scmp.le.s32.totalorder 1, %s10
      %p130 = scmp.lt.s32.totalorder %s10, 3
      %p131 = pnand %p129, %p130
      %p132 = pneg %p131
      // Predicated region
      $region9: #{tpu_custom_call.1} parent=5 // pred_check
        _
      $region10: #{tpu_custom_call.1} parent=5 // pred_check_branch
        %134 = sbr.rel (%p131) target = $region12
      $region11: #{tpu_custom_call.1} parent=5 // pred_region
        %s135 = ssub.s32 %s10, 1
        // Predicated region
        $region13: #{tpu_custom_call.1} parent=11 // pred_check
          %p136 = pneg %p43
        $region14: #{tpu_custom_call.1} parent=11 // pred_check_branch
          %138 = sbr.rel (%p136) target = $region16
        $region15: #{tpu_custom_call.1} parent=11 // pred_region
          _
        $region16: #{tpu_custom_call.1} parent=11 // pred_fallthru
          _
        // Predicated region
        $region17: #{tpu_custom_call.1} parent=11 // pred_check
          %p139 = pneg %p69
        $region18: #{tpu_custom_call.1} parent=11 // pred_check_branch
          %141 = sbr.rel (%p139) target = $region20
        $region19: #{tpu_custom_call.1} parent=11 // pred_region
          %s142 = smul.u32 16, %s20
          %p143 = scmp.lt.s32.totalorder %s142, 15
          %s144 = scalar_select %p143, %s142, 15
          %s145 = smul.addr %s144, 4
          %s146 = scalar_lea.vmem %s1, %s145
          %s147 = smul.u32 16, %s20
        $region20: #{tpu_custom_call.1} parent=11 // pred_fallthru
          _
        // Predicated region
        $region21: #{tpu_custom_call.1} parent=11 // pred_check
          %p148 = pneg %p95
        $region22: #{tpu_custom_call.1} parent=11 // pred_check_branch
          %150 = sbr.rel (%p148) target = $region24
        $region23: #{tpu_custom_call.1} parent=11 // pred_region
          %p151 = scmp.lt.s32.totalorder %s20, 0
          %s152 = scalar_select %p151, %s20, 0
          %s153 = scalar_lea.vmem %s2, %s152
        $region24: #{tpu_custom_call.1} parent=11 // pred_fallthru
          _
      $region12: #{tpu_custom_call.1} parent=5 // pred_fallthru
        _
      %p154 = scmp.lt.s32.totalorder %s10, 2
      // Predicated region
      $region25: #{tpu_custom_call.1} parent=5 // pred_check
        %p155 = pneg %p154
      $region26: #{tpu_custom_call.1} parent=5 // pred_check_branch
        %157 = sbr.rel (%p155) target = $region28
      $region27: #{tpu_custom_call.1} parent=5 // pred_region
        _
      $region28: #{tpu_custom_call.1} parent=5 // pred_fallthru
        _
      %p158 = scmp.le.s32.totalorder 1, %s10
      %p159 = scmp.lt.s32.totalorder %s10, 3
      %p160 = pnand %p158, %p159
      %p161 = pneg %p160
      // Predicated region
      $region29: #{tpu_custom_call.1} parent=5 // pred_check
        _
      $region30: #{tpu_custom_call.1} parent=5 // pred_check_branch
        %163 = sbr.rel (%p160) target = $region32
      $region31: #{tpu_custom_call.1} parent=5 // pred_region
        %s164 = ssub.s32 %s10, 1
        %p165 = pneg %p43
        %p166 = pneg %p40
        %s167 = smul.u32 16, %s20
        %p168 = scmp.lt.s32.totalorder %s167, 15
        %s169 = scalar_select %p168, %s167, 15
        %s170 = smul.addr %s169, 4
        %s171 = scalar_lea.vmem %s1, %s170
        %p172 = pneg %p69
        %p173 = pneg %p66
        %p174 = scmp.lt.s32.totalorder %s20, 0
        %s175 = scalar_select %p174, %s20, 0
        %s176 = scalar_lea.vmem %s2, %s175
        %p177 = pneg %p95
        %p178 = pneg %p92
        %p179 = pneg %p121
        %p180 = pneg %p118
        %s181 = smul.u32 16, %s20
        %p182 = scmp.lt.s32.totalorder %s181, 15
        %s183 = scalar_select %p182, %s181, 15
        %s184 = smul.addr %s183, 4
        %s185 = scalar_lea.vmem %s1, %s184
        %s186 = smul.u32 16, %s20
        %p187 = scmp.lt.s32.totalorder %s20, 0
        %s188 = scalar_select %p187, %s20, 0
        %s189 = scalar_lea.vmem %s2, %s188
        %p191 = scmp.eq.s32.totalorder %s19, 0
        %p192 = scmp.eq.s32.totalorder %s20, 0
        %p193 = pnand %p191, %p192
        %p194 = pneg %p193
        // Predicated region
        $region33: #{tpu_custom_call.1} parent=31 // pred_check
          _
        $region34: #{tpu_custom_call.1} parent=31 // pred_check_branch
          %196 = sbr.rel (%p193) target = $region36
        $region35: #{tpu_custom_call.1} parent=31 // pred_region
          %vm197 = vcmask 1024
          %198 = vst.msk [vmem:[#allocation2] sm:$0x3] %vm197, -1e+30
          %199 = vst.msk [vmem:[#allocation3] sm:$0x3] %vm197, 0.0
        $region36: #{tpu_custom_call.1} parent=31 // pred_fallthru
          _
        %v200 = vld [vmem:[%s0] sm:$0x1]
        %v201 = vld [vmem:[%s185] sm:$0xf]
        %v202 = vld [vmem:[%s185 + $0x4] sm:$0xf]
        %v203 = vld [vmem:[%s185 + $0x8] sm:$0xf]
        %v204 = vld [vmem:[%s185 + $0xc] sm:$0xf]
        %v205 = vld [vmem:[%s185 + $0x10] sm:$0xf]
        %v206 = vld [vmem:[%s185 + $0x14] sm:$0xf]
        %v207 = vld [vmem:[%s185 + $0x18] sm:$0xf]
        %v208 = vld [vmem:[%s185 + $0x1c] sm:$0xf]
        %v209 = vld [vmem:[%s185 + $0x20] sm:$0xf]
        %v210 = vld [vmem:[%s185 + $0x24] sm:$0xf]
        %v211 = vld [vmem:[%s185 + $0x28] sm:$0xf]
        %v212 = vld [vmem:[%s185 + $0x2c] sm:$0xf]
        %v213 = vld [vmem:[%s185 + $0x30] sm:$0xf]
        %v214 = vld [vmem:[%s185 + $0x34] sm:$0xf]
        %v215 = vld [vmem:[%s185 + $0x38] sm:$0xf]
        %v216 = vld [vmem:[%s185 + $0x3c] sm:$0xf]
        %v233 = vunpack.c.l.b16 %v201
        %v234 = vunpack.c.l.b16 %v202
        %v235 = vunpack.c.l.b16 %v203
        %v236 = vunpack.c.l.b16 %v204
        %v237 = vunpack.c.l.b16 %v205
        %v238 = vunpack.c.l.b16 %v206
        %v239 = vunpack.c.l.b16 %v207
        %v240 = vunpack.c.l.b16 %v208
        %v241 = vunpack.c.l.b16 %v209
        %v242 = vunpack.c.l.b16 %v210
        %v243 = vunpack.c.l.b16 %v211
        %v244 = vunpack.c.l.b16 %v212
        %v245 = vunpack.c.l.b16 %v213
        %v246 = vunpack.c.l.b16 %v214
        %v247 = vunpack.c.l.b16 %v215
        %v248 = vunpack.c.l.b16 %v216
        %v249 = vpack.c.b16 %v234, %v233
        %v250 = vpack.c.b16 %v236, %v235
        %v251 = vpack.c.b16 %v238, %v237
        %v252 = vpack.c.b16 %v240, %v239
        %v253 = vpack.c.b16 %v242, %v241
        %v254 = vpack.c.b16 %v244, %v243
        %v255 = vpack.c.b16 %v246, %v245
        %v256 = vpack.c.b16 %v248, %v247
        %vm257 = vcmask 261120
        %v259 = vsel %vm257, %v200, 0
        %v262 = vsel %vm257, %v249, 0
        %v265 = vsel %vm257, %v250, 0
        %v268 = vsel %vm257, %v251, 0
        %v271 = vsel %vm257, %v252, 0
        %v274 = vsel %vm257, %v253, 0
        %v277 = vsel %vm257, %v254, 0
        %v280 = vsel %vm257, %v255, 0
        %v283 = vsel %vm257, %v256, 0
        %285 = vmatprep.subr.bf16.mxu0 0
        %286 = vmatpush1.bf16.xpose.msra.mxu0 %v283
        %287 = vmatprep.subr.bf16.mxu0 0
        %288 = vmatpush1.bf16.xpose.msra.mxu0 %v280
        %289 = vmatprep.subr.bf16.mxu0 0
        %290 = vmatpush1.bf16.xpose.msra.mxu0 %v277
        %291 = vmatprep.subr.bf16.mxu0 0
        %292 = vmatpush1.bf16.xpose.msra.mxu0 %v274
        %293 = vmatprep.subr.bf16.mxu0 0
        %294 = vmatpush1.bf16.xpose.msra.mxu0 %v271
        %295 = vmatprep.subr.bf16.mxu0 0
        %296 = vmatpush1.bf16.xpose.msra.mxu0 %v268
        %297 = vmatprep.subr.bf16.mxu0 0
        %298 = vmatpush1.bf16.xpose.msra.mxu0 %v265
        %299 = vmatprep.subr.bf16.mxu0 0
        %300 = vmatpush1.bf16.xpose.msra.mxu0 %v262
        %301 = vmatprep.subr.bf16.mxu0 0
        %302 = vmatpush2.bf16.xpose.msra.mxu0 0
        %303 = vmatprep.subr.bf16.mxu0 0
        %304 = vmatpush2.bf16.xpose.msra.mxu0 0
        %305 = vmatprep.subr.bf16.mxu0 0
        %306 = vmatpush2.bf16.xpose.msra.mxu0 0
        %307 = vmatprep.subr.bf16.mxu0 0
        %308 = vmatpush2.bf16.xpose.msra.mxu0 0
        %309 = vmatprep.subr.bf16.mxu0 0
        %310 = vmatpush2.bf16.xpose.msra.mxu0 0
        %311 = vmatprep.subr.bf16.mxu0 0
        %312 = vmatpush2.bf16.xpose.msra.mxu0 0
        %313 = vmatprep.subr.bf16.mxu0 0
        %314 = vmatpush2.bf16.xpose.msra.mxu0 0
        %315 = vmatprep.subr.bf16.mxu0 0
        %316 = vmatpush2.bf16.xpose.msra.mxu0 0
        %317 = vmatprep.mubr.bf16.mxu0 0
        %318 = vmatmul.mubr.bf16.gmra.mxu0 %v259
        %v319 = vpop.f32.mrf.mxu0
        %v320 = vadd.f32 0.0, %v319
        %v321 = vpop.f32.mrf.mxu0
        %v322 = vpop.f32.mrf.mxu0
        %v323 = vpop.f32.mrf.mxu0
        %324 = vdwg.mxu0
        %v325 = vld [vmem:[%s189] sm:$0x1]
        %v326 = vlaneseq
        %v327 = vshrl.u32 %v326, 7
        %v328 = vlaneseq
        %v329 = vshrl.u32 %v328, 7
        %v330 = vsub.s32 0, %v329
        %v331 = vrot.slane %v325, %v330
        %vm332 = vcmp.eq.s32.totalorder %v327, %v331
        %v333 = vsel %vm332, %v320, -1e+30
        // Predicated region
        $region37: #{tpu_custom_call.1} parent=31 // pred_check
          %p334 = pneg %p191
        $region38: #{tpu_custom_call.1} parent=31 // pred_check_branch
          %336 = sbr.rel (%p334) target = $region40
        $region39: #{tpu_custom_call.1} parent=31 // pred_region
          %v337 = vld [vmem:[#allocation2] sm:$0x3]
          %vm338 = vcmask 1041408
          %v339 = vsel %vm338, %v333, -inf
          %340 = vmax.xlane.f32.xlu0 %v339
          %v341 = vpop.xlane.xlu0 %340
          %v342 = vmax.f32 %v337, %v341
          %344 = vset.pattern.permute.xlu0 0
          %345 = vperm.xlu0 %344, %v342
          %v346 = vpop.permute.xlu0 %345
          %v348 = vsub.f32 %v333, %v346
          %v349 = vmul.f32 %v348, 1.442695
          %v350 = vpow.pop %v349
          %v351 = vsel %vm332, %v350, 0.0
          %v352 = vld [vmem:[#allocation3] sm:$0x3]
          %v353 = vsub.f32 %v337, %v342
          %v354 = vmul.f32 %v353, 1.442695
          %v355 = vpow.pop %v354
          %v356 = vmul.f32 %v352, %v355
          %v357 = vsel %vm338, %v351, 0.0
          %358 = vadd.xlane.f32.xlu0 %v357
          %v359 = vpop.xlane.xlu0 %358
          %v360 = vadd.f32 %v356, %v359
          %vm361 = vcmask 1024
          %362 = vst.msk [vmem:[#allocation3] sm:$0x3] %vm361, %v360
          %363 = vst.msk [vmem:[#allocation2] sm:$0x3] %vm361, %v342
          %364 = vst [vmem:[#allocation4] sm:$0x1] 0.0
        $region40: #{tpu_custom_call.1} parent=31 // pred_fallthru
          _
        %p365 = scmp.eq.s32.totalorder %s19, 1
        // Predicated region
        $region41: #{tpu_custom_call.1} parent=31 // pred_check
          %p366 = pneg %p365
        $region42: #{tpu_custom_call.1} parent=31 // pred_check_branch
          %368 = sbr.rel (%p366) target = $region44
        $region43: #{tpu_custom_call.1} parent=31 // pred_region
          %v369 = vld [vmem:[#allocation2] sm:$0x3]
          %371 = vset.pattern.permute.xlu0 0
          %372 = vperm.xlu0 %371, %v369
          %v373 = vpop.permute.xlu0 %372
          %v375 = vsub.f32 %v333, %v373
          %v376 = vmul.f32 %v375, 1.442695
          %v377 = vpow.pop %v376
          %v378 = vld [vmem:[#allocation3] sm:$0x3]
          %v379 = vrcp.pop %v378
          %v380 = vmul.f32 1.0, %v379
          %382 = vset.pattern.permute.xlu0 0
          %383 = vperm.xlu0 %382, %v380
          %v384 = vpop.permute.xlu0 %383
          %v386 = vmul.f32 %v377, %v384
          %vm387 = vcmask 1041408
          %v388 = vsel %vm387, %v386, 0.0
          %v389 = vrot.slane %v388, 4
          %v390 = vadd.f32 %v388, %v389
          %v391 = vrot.slane %v390, 2
          %v392 = vadd.f32 %v390, %v391
          %v393 = vrot.slane %v392, 1
          %v394 = vadd.f32 %v392, %v393
          %395 = vst [vmem:[#allocation4] sm:$0x1] %v394
        $region44: #{tpu_custom_call.1} parent=31 // pred_fallthru
          _
        // Predicated region
        $region45: #{tpu_custom_call.1} parent=31 // pred_check
          %p396 = pneg %p118
        $region46: #{tpu_custom_call.1} parent=31 // pred_check_branch
          %398 = sbr.rel (%p396) target = $region48
        $region47: #{tpu_custom_call.1} parent=31 // pred_region
          %s400 = ssub.s32 16, 16
          %401 = vsyncadd [#allocation5], %s400
          %s402 = smul.addr %s20, 16
          %s403 = scalar_lea.hbm %s3, %s402
          %s405 = sshll.u32 [#allocation4], 4
          %s406 = int_to_ptr.vmem [resolvable:$true] %s405
          %408 = dma.vmem_to_hbm [thread:$0]  %s406, 16, %s403, [#allocation5]
        $region48: #{tpu_custom_call.1} parent=31 // pred_fallthru
          _
        // Predicated region
        $region49: #{tpu_custom_call.1} parent=31 // pred_check
          %p409 = pneg %p118
        $region50: #{tpu_custom_call.1} parent=31 // pred_check_branch
          %411 = sbr.rel (%p409) target = $region52
        $region51: #{tpu_custom_call.1} parent=31 // pred_region
          %412 = dma.done [#allocation5], 16
        $region52: #{tpu_custom_call.1} parent=31 // pred_fallthru
          _
      $region32: #{tpu_custom_call.1} parent=5 // pred_fallthru
        _
      %p413 = scmp.le.s32.totalorder 2, %s10
      // Predicated region
      $region53: #{tpu_custom_call.1} parent=5 // pred_check
        %p414 = pneg %p413
      $region54: #{tpu_custom_call.1} parent=5 // pred_check_branch
        %416 = sbr.rel (%p414) target = $region56
      $region55: #{tpu_custom_call.1} parent=5 // pred_region
        %s417 = ssub.s32 %s10, 2
      $region56: #{tpu_custom_call.1} parent=5 // pred_fallthru
        _
    $region6: #{tpu_custom_call.1} parent=1 // loop_footer
      %s14 = sadd.s32 1, %s10
    $region7: #{tpu_custom_call.1} parent=1 // loop_footer_branch
      %9 = sbr.rel target = $region3
    $region8: #{tpu_custom_call.1} parent=1 // loop_exit
      _
    %418 = vsyncpa [#allocation5], 1
    %s419 = scalar_lea.sflag [#allocation5], 1
    %420 = vsyncpa %s419, 1

</llo_original>
